<compile_context>
chip_gen: v7x
topology: tpu7x:2x2x1
jax: 0.10.0
libtpu: 0.0.40
codegen_flags: <defaults>
</compile_context>

<pallas_src>
import functools

import jax
import jax.numpy as jnp
from jax.experimental import pallas as pl
from jax.experimental.pallas import tpu as pltpu

LN_EPS = 1e-5  # PyTorch nn.LayerNorm default


# ----------------------------------------------------------------------------
# Hardware-aware budgets (computed lazily at trace time, not import time).
# ----------------------------------------------------------------------------
@functools.lru_cache(maxsize=None)
def _tpu_budget():
    """Returns (vmem_limit_bytes_or_None, col_tile_cap, row_tile_cap)."""
    try:
        vmem = int(pltpu.get_tpu_info().vmem_capacity_bytes)
    except Exception:
        return None, 2048, 1024
    limit = int(vmem * 3 // 4)
    if vmem <= 64 * 1024 * 1024:          # v7x-class: 64 MiB physical VMEM
        return limit, 1024, 512
    return limit, 2048, 1024              # v5e / v6e: 128 MiB physical VMEM


@functools.lru_cache(maxsize=None)
def _single_buffer_supported():
    """Probe whether pipeline_mode=pl.Buffered(1) is accepted by this jax/Mosaic."""
    try:
        def probe(x_ref, o_ref):
            o_ref[...] = x_ref[...] + 1.0

        spec = pl.BlockSpec((8, 128), lambda i: (0, 0),
                            pipeline_mode=pl.Buffered(1))
        fn = pl.pallas_call(
            probe,
            out_shape=jax.ShapeDtypeStruct((8, 128), jnp.float32),
            grid=(1,),
            in_specs=[spec],
            out_specs=pl.BlockSpec((8, 128), lambda i: (0, 0)))
        jax.jit(fn).lower(jnp.zeros((8, 128), jnp.float32)).compile()
        return True
    except Exception:
        return False


def _const_spec(shape):
    """Grid-invariant block (always block (0,...,0)); single-buffered when possible."""
    n = len(shape)
    index_map = lambda *_: (0,) * n
    if _single_buffer_supported():
        return pl.BlockSpec(shape, index_map, pipeline_mode=pl.Buffered(1))
    return pl.BlockSpec(shape, index_map)


def _pick_tile(n, cap):
    """Largest multiple-of-128 divisor of n that is <= cap, else the full dim."""
    if n <= cap:
        return n
    best = None
    t = 128
    while t <= cap:
        if n % t == 0:
            best = t
        t += 128
    return best if best is not None else n


def _pick_row_tile(m, cap):
    """Largest multiple-of-8 divisor of m that is <= cap, else the full dim."""
    if m <= cap:
        return m
    best = None
    t = 8
    while t <= cap:
        if m % t == 0:
            best = t
        t += 8
    return best if best is not None else m


def _layernorm(x, w2d, b2d):
    # x: (R, C) f32; w2d, b2d: (1, C) f32
    mu = jnp.mean(x, axis=-1, keepdims=True)
    var = jnp.mean((x - mu) ** 2, axis=-1, keepdims=True)
    return (x - mu) * jax.lax.rsqrt(var + LN_EPS) * w2d + b2d


# ----------------------------------------------------------------------------
# Kernels
# ----------------------------------------------------------------------------
def qkv_kernel(x_ref, lnw_ref, lnb_ref, wqkv_ref, q_ref, k_ref, v_ref):
    """LN1 + fused qkv projection for one row-tile; q has 1/sqrt(dh) folded in.
    Output is bf16 once (halves the live intermediate vs per-head f32 casts)."""
    C = q_ref.shape[-1]
    xn = _layernorm(x_ref[...], lnw_ref[...], lnb_ref[...]).astype(jnp.bfloat16)
    qkv = jnp.dot(xn, wqkv_ref[...],
                  preferred_element_type=jnp.float32).astype(jnp.bfloat16)
    q_ref[...] = qkv[:, :C]
    k_ref[...] = qkv[:, C:2 * C]
    v_ref[...] = qkv[:, 2 * C:]


def attn_kernel(x_ref, q_ref, k_ref, v_ref, wo_ref, bo_ref, o_ref, ctx_ref, *,
                heads):
    """Attention core + output projection + residual for one (batch, q-tile)."""
    qi = pl.program_id(1)
    x = x_ref[0]                              # (tq, C) f32 residual stream
    q = q_ref[0]                              # (tq, C) bf16, scale pre-folded
    k = k_ref[0]                              # (T,  C) bf16
    v = v_ref[0]                              # (T,  C) bf16
    tq, C = q.shape
    T = k.shape[0]
    dh = C // heads

    # Additive causal bias, built once per q-tile and shared across all heads.
    row = jax.lax.broadcasted_iota(jnp.int32, (tq, T), 0) + qi * tq
    col = jax.lax.broadcasted_iota(jnp.int32, (tq, T), 1)
    bias = jnp.where(col > row, jnp.float32(-1e30), jnp.float32(0.0))

    # TODO(synk): heads is small & static; lane-aligned head packing + fori_loop
    # would bound live ranges for large head counts.
    for h in range(heads):
        lo, hi = h * dh, (h + 1) * dh
        s = jax.lax.dot_general(q[:, lo:hi], k[:, lo:hi],
                                (((1,), (1,)), ((), ())),
                                preferred_element_type=jnp.float32)   # (tq, T)
        s = s + bias
        s = s - jnp.max(s, axis=-1, keepdims=True)
        e = jnp.exp(s)
        p = e * pl.reciprocal(jnp.sum(e, axis=-1, keepdims=True), approx=True)
        ctx_ref[:, lo:hi] = jnp.dot(
            p.astype(jnp.bfloat16), v[:, lo:hi],
            preferred_element_type=jnp.float32).astype(jnp.bfloat16)

    o_ref[0] = x + jnp.dot(ctx_ref[...], wo_ref[...],
                           preferred_element_type=jnp.float32) + bo_ref[...]


def ffn_kernel(x_ref, ln2w_ref, ln2b_ref, w1_ref, b1_ref, w2_ref, b2_ref,
               o_ref, xn_ref):
    """x -> x + W2(ReLU(W1*LN2(x)+b1)) + b2.  Grid axis 1 tiles the hidden dim
    (reduction); LN is computed once per row-tile into xn_ref and the output
    block itself is the accumulator."""
    cf = pl.program_id(1)

    @pl.when(cf == 0)
    def _init():
        xn_ref[...] = _layernorm(x_ref[...], ln2w_ref[...],
                                 ln2b_ref[...]).astype(jnp.bfloat16)
        o_ref[...] = x_ref[...]

    h = jnp.dot(xn_ref[...], w1_ref[...],
                preferred_element_type=jnp.float32) + b1_ref[...]
    h = jnp.maximum(h, 0.0).astype(jnp.bfloat16)      # ReLU
    o_ref[...] += jnp.dot(h, w2_ref[...], preferred_element_type=jnp.float32)

    @pl.when(cf == pl.num_programs(1) - 1)
    def _finalize():
        o_ref[...] += b2_ref[...]


def head_kernel(x_ref, lnw_ref, lnb_ref, wlm_ref, o_ref, xn_ref):
    """final_layer_norm + lm_head (no bias); LN hoisted out of the vocab loop."""
    @pl.when(pl.program_id(1) == 0)
    def _():
        xn_ref[...] = _layernorm(x_ref[...], lnw_ref[...],
                                 lnb_ref[...]).astype(jnp.bfloat16)
    o_ref[...] = jnp.dot(xn_ref[...], wlm_ref[...],
                         preferred_element_type=jnp.float32)


# ----------------------------------------------------------------------------
# pallas_call wrappers
# ----------------------------------------------------------------------------
def run_qkv(x2d, p):
    M, C = x2d.shape
    vmem_limit, _, row_cap = _tpu_budget()
    tm = _pick_row_tile(M, row_cap)
    n_m = M // tm
    cost = pl.CostEstimate(
        flops=int(2 * M * C * 3 * C),
        transcendentals=int(M),
        bytes_accessed=int(M * C * 4 + C * 3 * C * 2 + 3 * M * C * 2))
    return pl.pallas_call(
        qkv_kernel,
        out_shape=tuple(jax.ShapeDtypeStruct((M, C), jnp.bfloat16)
                        for _ in range(3)),
        grid=(n_m,),
        in_specs=[
            pl.BlockSpec((tm, C), lambda m: (m, 0)),          # x rows
            _const_spec((1, C)), _const_spec((1, C)),         # ln1 w/b
            _const_spec((C, 3 * C)),                          # fused qkv weight
        ],
        out_specs=tuple(pl.BlockSpec((tm, C), lambda m: (m, 0))
                        for _ in range(3)),
        compiler_params=pltpu.CompilerParams(
            dimension_semantics=("parallel",),
            vmem_limit_bytes=vmem_limit),
        cost_estimate=cost,
    )(x2d, p["ln1_w"], p["ln1_b"], p["wqkv_t"])


def run_attn(x2d, q, k, v, p, heads, B, T):
    M, C = x2d.shape
    x3 = x2d.reshape(B, T, C)
    q3, k3, v3 = (a.reshape(B, T, C) for a in (q, k, v))
    vmem_limit, _, row_cap = _tpu_budget()
    tq = _pick_row_tile(T, min(256, row_cap))
    n_q = T // tq
    cost = pl.CostEstimate(
        flops=int(B * (4 * T * T * C + 2 * T * C * C)),
        transcendentals=int(B * T * (T + 1)),
        bytes_accessed=int(2 * B * T * C * 4 + 3 * B * T * C * 2 + C * C * 2))
    out = pl.pallas_call(
        functools.partial(attn_kernel, heads=heads),
        out_shape=jax.ShapeDtypeStruct((B, T, C), jnp.float32),
        grid=(B, n_q),
        in_specs=[
            pl.BlockSpec((1, tq, C), lambda b, qi: (b, qi, 0)),  # x residual rows
            pl.BlockSpec((1, tq, C), lambda b, qi: (b, qi, 0)),  # q tile
            pl.BlockSpec((1, T, C), lambda b, qi: (b, 0, 0)),    # all keys
            pl.BlockSpec((1, T, C), lambda b, qi: (b, 0, 0)),    # all values
            _const_spec((C, C)),                                 # wo (pre-T bf16)
            _const_spec((1, C)),                                 # bo
        ],
        out_specs=pl.BlockSpec((1, tq, C), lambda b, qi: (b, qi, 0)),
        scratch_shapes=[pltpu.VMEM((tq, C), jnp.bfloat16)],      # per-head ctx slab
        compiler_params=pltpu.CompilerParams(
            dimension_semantics=("parallel", "parallel"),
            vmem_limit_bytes=vmem_limit),
        cost_estimate=cost,
    )(x3, q3, k3, v3, p["wo_t"], p["bo"])
    return out.reshape(M, C)


def run_ffn(x2d, p):
    M, C = x2d.shape
    Cf = p["w1_t"].shape[1]
    vmem_limit, col_cap, row_cap = _tpu_budget()
    tm = _pick_row_tile(M, row_cap)
    tcf = _pick_tile(Cf, col_cap)
    n_m, ncf = M // tm, Cf // tcf
    cost = pl.CostEstimate(
        flops=int(4 * M * C * Cf),
        transcendentals=int(M),
        bytes_accessed=int(2 * M * C * 4 + 2 * C * Cf * 2 + Cf * 4 + C * 4))
    return pl.pallas_call(
        ffn_kernel,
        out_shape=jax.ShapeDtypeStruct((M, C), jnp.float32),
        grid=(n_m, ncf),
        in_specs=[
            pl.BlockSpec((tm, C), lambda m, cf: (m, 0)),      # x rows
            _const_spec((1, C)), _const_spec((1, C)),          # ln2 w/b
            pl.BlockSpec((C, tcf), lambda m, cf: (0, cf)),     # w1 tile (pre-T bf16)
            pl.BlockSpec((1, tcf), lambda m, cf: (0, cf)),     # b1 tile
            pl.BlockSpec((tcf, C), lambda m, cf: (cf, 0)),     # w2 tile (pre-T bf16)
            _const_spec((1, C)),                               # b2
        ],
        out_specs=pl.BlockSpec((tm, C), lambda m, cf: (m, 0)),
        scratch_shapes=[pltpu.VMEM((tm, C), jnp.bfloat16)],    # hoisted LN(x)
        compiler_params=pltpu.CompilerParams(
            dimension_semantics=("parallel", "arbitrary"),
            vmem_limit_bytes=vmem_limit),
        cost_estimate=cost,
    )(x2d, p["ln2_w"], p["ln2_b"], p["w1_t"], p["b1"], p["w2_t"], p["b2"])


def run_head(x2d, ln_w, ln_b, w_lm_t):
    M, C = x2d.shape
    V = w_lm_t.shape[1]
    vmem_limit, col_cap, row_cap = _tpu_budget()
    tm = _pick_row_tile(M, row_cap)
    tv = _pick_tile(V, col_cap)
    n_m, nv = M // tm, V // tv
    cost = pl.CostEstimate(
        flops=int(2 * M * C * V),
        transcendentals=int(M),
        bytes_accessed=int(M * C * 4 + C * V * 2 + M * V * 4))
    return pl.pallas_call(
        head_kernel,
        out_shape=jax.ShapeDtypeStruct((M, V), jnp.float32),
        grid=(n_m, nv),
        in_specs=[
            pl.BlockSpec((tm, C), lambda m, v: (m, 0)),        # x rows
            _const_spec((1, C)), _const_spec((1, C)),          # final ln w/b
            pl.BlockSpec((C, tv), lambda m, v: (0, v)),        # lm_head tile
        ],
        out_specs=pl.BlockSpec((tm, tv), lambda m, v: (m, v)), # lane-dense tiles
        scratch_shapes=[pltpu.VMEM((tm, C), jnp.bfloat16)],    # hoisted LN(x)
        compiler_params=pltpu.CompilerParams(
            dimension_semantics=("parallel", "arbitrary"),
            vmem_limit_bytes=vmem_limit),
        cost_estimate=cost,
    )(x2d, ln_w, ln_b, w_lm_t)


# ----------------------------------------------------------------------------
# Parameters: PyTorch-layout init + one-time packing into kernel layout.
# ----------------------------------------------------------------------------
def init_params(key, config):
    V, C, L, S = (config["vocab_size"], config["n_embd"],
                  config["n_layers"], config["block_size"])
    Cf = 4 * C
    keys = iter(jax.random.split(key, 8 + 8 * L))

    def w(shape, scale=0.02):
        return (scale * jax.random.normal(next(keys), shape)).astype(jnp.float32)

    params = {
        "tok_emb": w((V, C)),
        "pos_emb": w((S, C)),
        "final_ln_w": jnp.ones((1, C), jnp.float32),
        "final_ln_b": jnp.zeros((1, C), jnp.float32),
        "w_lm": w((V, C)),                       # PyTorch layout [out, in]
        "blocks": [],
    }
    for _ in range(L):
        params["blocks"].append({
            "ln1_w": jnp.ones((1, C), jnp.float32),
            "ln1_b": jnp.zeros((1, C), jnp.float32),
            "wq": w((C, C)), "wk": w((C, C)), "wv": w((C, C)),
            "wo": w((C, C)), "bo": jnp.zeros((1, C), jnp.float32),
            "ln2_w": jnp.ones((1, C), jnp.float32),
            "ln2_b": jnp.zeros((1, C), jnp.float32),
            "w1": w((Cf, C)), "b1": jnp.zeros((1, Cf), jnp.float32),
            "w2": w((C, Cf)), "b2": jnp.zeros((1, C), jnp.float32),
        })
    return params


def pack_params(params, n_heads):
    """Pre-transpose to [in, out], fuse qkv, fold the attention scale into wq,
    and cast matmul weights to bf16 (done once, outside the kernels)."""
    bf = jnp.bfloat16
    packed = {
        "tok_emb": params["tok_emb"],
        "pos_emb": params["pos_emb"],
        "final_ln_w": params["final_ln_w"],
        "final_ln_b": params["final_ln_b"],
        "w_lm_t": params["w_lm"].T.astype(bf),   # (C, V)
        "blocks": [],
    }
    for p in params["blocks"]:
        C = p["wq"].shape[0]
        scale = (C // n_heads) ** -0.5
        wqkv_t = jnp.concatenate(
            [(p["wq"] * scale).T, p["wk"].T, p["wv"].T], axis=1).astype(bf)  # (C, 3C)
        packed["blocks"].append({
            "ln1_w": p["ln1_w"], "ln1_b": p["ln1_b"],
            "wqkv_t": wqkv_t,
            "wo_t": p["wo"].T.astype(bf), "bo": p["bo"],
            "ln2_w": p["ln2_w"], "ln2_b": p["ln2_b"],
            "w1_t": p["w1"].T.astype(bf), "b1": p["b1"],
            "w2_t": p["w2"].T.astype(bf), "b2": p["b2"],
        })
    return packed


def decoder_only_forward(batch, kparams, config):
    """Equivalent of DecoderOnlyModel.forward(batch, targets=None) -> (logits, None)."""
    B, T = batch.shape
    heads = config["n_heads"]
    # Embedding gather + positional embedding (glue, plain JAX).
    x = kparams["tok_emb"][batch] + kparams["pos_emb"][jnp.arange(T)]
    C = x.shape[-1]
    x = x.astype(jnp.float32).reshape(B * T, C)       # flattened row axis (B*T)
    for bp in kparams["blocks"]:
        q, k, v = run_qkv(x, bp)
        x = run_attn(x, q, k, v, bp, heads, B, T)
        x = run_ffn(x, bp)
    logits = run_head(x, kparams["final_ln_w"], kparams["final_ln_b"],
                      kparams["w_lm_t"])
    # TODO(synk): cross-entropy loss (targets path) and generate() sampling are
    # host/XLA-level glue and not implemented as kernels.
    return logits.reshape(B, T, -1), None


# ----------------------------------------------------------------------------
# Pure-JAX reference (mirrors the kernels' bf16-operand / f32-accum matmuls).
# ----------------------------------------------------------------------------
def _ref_forward(batch, params, config):
    heads = config["n_heads"]
    B, T = batch.shape
    x = (params["tok_emb"][batch] + params["pos_emb"][jnp.arange(T)]).astype(jnp.float32)
    C = x.shape[-1]
    dh = C // heads
    scale = dh ** -0.5
    bf = jnp.bfloat16

    def mm(a, b):
        return jnp.einsum("...k,kj->...j", a.astype(bf), b.astype(bf),
                          preferred_element_type=jnp.float32)

    def ln(y, w, b):
        mu = y.mean(-1, keepdims=True)
        var = ((y - mu) ** 2).mean(-1, keepdims=True)
        return (y - mu) / jnp.sqrt(var + LN_EPS) * w[0] + b[0]

    for p in params["blocks"]:
        xn = ln(x, p["ln1_w"], p["ln1_b"])
        q = mm(xn, p["wq"].T) * scale
        k = mm(xn, p["wk"].T)
        v = mm(xn, p["wv"].T)
        q = q.reshape(B, T, heads, dh).transpose(0, 2, 1, 3)
        k = k.reshape(B, T, heads, dh).transpose(0, 2, 1, 3)
        v = v.reshape(B, T, heads, dh).transpose(0, 2, 1, 3)
        s = jnp.einsum("bhqd,bhkd->bhqk", q.astype(bf), k.astype(bf),
                       preferred_element_type=jnp.float32)
        mask = jnp.triu(jnp.ones((T, T), bool), 1)
        s = jnp.where(mask, -jnp.finfo(jnp.float32).max, s)
        a = jax.nn.softmax(s, axis=-1)
        o = jnp.einsum("bhqk,bhkd->bhqd", a.astype(bf), v.astype(bf),
                       preferred_element_type=jnp.float32)
        o = o.transpose(0, 2, 1, 3).reshape(B, T, C)
        x = x + mm(o, p["wo"].T) + p["bo"][0]
        xn2 = ln(x, p["ln2_w"], p["ln2_b"])
        h = jnp.maximum(mm(xn2, p["w1"].T) + p["b1"][0], 0.0)
        x = x + mm(h, p["w2"].T) + p["b2"][0]
    xf = ln(x, params["final_ln_w"], params["final_ln_b"])
    return mm(xf, params["w_lm"].T)


if __name__ == "__main__":
    config = dict(vocab_size=64, block_size=16, n_embd=32, n_heads=4, n_layers=2)
    key = jax.random.PRNGKey(0)
    k_param, k_tok = jax.random.split(key)
    params = init_params(k_param, config)
    kparams = pack_params(params, config["n_heads"])

    B, T = 2, 8
    batch = jax.random.randint(k_tok, (B, T), 0, config["vocab_size"], dtype=jnp.int32)

    logits, loss = decoder_only_forward(batch, kparams, config)
    logits = jax.block_until_ready(logits)
    assert logits.shape == (B, T, config["vocab_size"])
    assert loss is None

    ref = jax.block_until_ready(_ref_forward(batch, params, config))
    max_err = float(jnp.max(jnp.abs(logits - ref)))
    assert jnp.allclose(logits, ref, atol=1e-2, rtol=1e-2), max_err

    print("KERNEL_OK")
</pallas_src>

<mosaic_0001>
module attributes {stable_mosaic.version = 11 : i64} {
  func.func @qkv_kernel(%arg0: i32, %arg1: memref<16x32xf32, #tpu.memory_space<vmem>>, %arg2: memref<1x32xf32, #tpu.memory_space<vmem>>, %arg3: memref<1x32xf32, #tpu.memory_space<vmem>>, %arg4: memref<32x96xbf16, #tpu.memory_space<vmem>>, %arg5: memref<16x32xbf16, #tpu.memory_space<vmem>>, %arg6: memref<16x32xbf16, #tpu.memory_space<vmem>>, %arg7: memref<16x32xbf16, #tpu.memory_space<vmem>>) attributes {dimension_semantics = [#tpu.dimension_semantics<parallel>], iteration_bounds = array<i64: 1>, scalar_prefetch = 0 : i64, scratch_operands = 0 : i64, tpu.core_type = #tpu.core_type<tc>, window_params = [{transform_indices = @transform_0, window_bounds = array<i64: 16, 32>}, {pipeline_mode = #tpu.pipeline_mode<synchronous>, transform_indices = @transform_1, window_bounds = array<i64: 1, 32>}, {pipeline_mode = #tpu.pipeline_mode<synchronous>, transform_indices = @transform_2, window_bounds = array<i64: 1, 32>}, {pipeline_mode = #tpu.pipeline_mode<synchronous>, transform_indices = @transform_3, window_bounds = array<i64: 32, 96>}, {transform_indices = @transform_4, window_bounds = array<i64: 16, 32>}, {transform_indices = @transform_5, window_bounds = array<i64: 16, 32>}, {transform_indices = @transform_6, window_bounds = array<i64: 16, 32>}]} {
    %c0 = arith.constant 0 : index
    %c0_0 = arith.constant 0 : index
    %0 = vector.load %arg1[%c0, %c0_0] : memref<16x32xf32, #tpu.memory_space<vmem>>, vector<16x32xf32>
    %c0_1 = arith.constant 0 : index
    %c0_2 = arith.constant 0 : index
    %1 = vector.load %arg2[%c0_1, %c0_2] : memref<1x32xf32, #tpu.memory_space<vmem>>, vector<1x32xf32>
    %c0_3 = arith.constant 0 : index
    %c0_4 = arith.constant 0 : index
    %2 = vector.load %arg3[%c0_3, %c0_4] : memref<1x32xf32, #tpu.memory_space<vmem>>, vector<1x32xf32>
    %cst = arith.constant dense<0.000000e+00> : vector<16xf32>
    %3 = vector.multi_reduction <add>, %0, %cst [1] : vector<16x32xf32> to vector<16xf32>
    %4 = vector.shape_cast %3 : vector<16xf32> to vector<16x1xf32>
    %cst_5 = arith.constant 3.200000e+01 : f32
    %5 = vector.broadcast %cst_5 : f32 to vector<16x1xf32>
    %6 = arith.divf %4, %5 : vector<16x1xf32>
    %7 = vector.broadcast %6 : vector<16x1xf32> to vector<16x32xf32>
    %8 = arith.subf %0, %7 : vector<16x32xf32>
    %9 = arith.mulf %8, %8 : vector<16x32xf32>
    %cst_6 = arith.constant dense<0.000000e+00> : vector<16xf32>
    %10 = vector.multi_reduction <add>, %9, %cst_6 [1] : vector<16x32xf32> to vector<16xf32>
    %11 = vector.shape_cast %10 : vector<16xf32> to vector<16x1xf32>
    %cst_7 = arith.constant 3.200000e+01 : f32
    %12 = vector.broadcast %cst_7 : f32 to vector<16x1xf32>
    %13 = arith.divf %11, %12 : vector<16x1xf32>
    %14 = vector.broadcast %6 : vector<16x1xf32> to vector<16x32xf32>
    %15 = arith.subf %0, %14 : vector<16x32xf32>
    %cst_8 = arith.constant 9.99999974E-6 : f32
    %16 = vector.broadcast %cst_8 : f32 to vector<16x1xf32>
    %17 = arith.addf %13, %16 : vector<16x1xf32>
    %18 = math.rsqrt %17 : vector<16x1xf32>
    %19 = vector.broadcast %18 : vector<16x1xf32> to vector<16x32xf32>
    %20 = arith.mulf %15, %19 : vector<16x32xf32>
    %21 = vector.broadcast %1 : vector<1x32xf32> to vector<16x32xf32>
    %22 = arith.mulf %20, %21 : vector<16x32xf32>
    %23 = vector.broadcast %2 : vector<1x32xf32> to vector<16x32xf32>
    %24 = arith.addf %22, %23 : vector<16x32xf32>
    %25 = arith.truncf %24 : vector<16x32xf32> to vector<16x32xbf16>
    %c0_9 = arith.constant 0 : index
    %c0_10 = arith.constant 0 : index
    %26 = vector.load %arg4[%c0_9, %c0_10] : memref<32x96xbf16, #tpu.memory_space<vmem>>, vector<32x96xbf16>
    %cst_11 = arith.constant dense<0.000000e+00> : vector<16x96xf32>
    %27 = tpu.matmul %25, %26, %cst_11 {dimension_numbers = #tpu.dot_dimension_numbers<[1], [0], [0], [1], [0, 0, 1, 1], [], []>} : vector<16x32xbf16>, vector<32x96xbf16>, vector<16x96xf32> -> vector<16x96xf32>
    %28 = arith.truncf %27 : vector<16x96xf32> to vector<16x96xbf16>
    %29 = vector.extract_strided_slice %28 {offsets = [0, 0], sizes = [16, 32], strides = [1, 1]} : vector<16x96xbf16> to vector<16x32xbf16>
    %c0_12 = arith.constant 0 : index
    %c0_13 = arith.constant 0 : index
    %30 = vector.load %arg5[%c0_12, %c0_13] : memref<16x32xbf16, #tpu.memory_space<vmem>>, vector<16x32xbf16>
    tpu.vector_store %arg5[%c0_12, %c0_13], %29 {strides = array<i32>} : memref<16x32xbf16, #tpu.memory_space<vmem>>, vector<16x32xbf16>,
    %31 = vector.extract_strided_slice %28 {offsets = [0, 32], sizes = [16, 32], strides = [1, 1]} : vector<16x96xbf16> to vector<16x32xbf16>
    %c0_14 = arith.constant 0 : index
    %c0_15 = arith.constant 0 : index
    %32 = vector.load %arg6[%c0_14, %c0_15] : memref<16x32xbf16, #tpu.memory_space<vmem>>, vector<16x32xbf16>
    tpu.vector_store %arg6[%c0_14, %c0_15], %31 {strides = array<i32>} : memref<16x32xbf16, #tpu.memory_space<vmem>>, vector<16x32xbf16>,
    %33 = vector.extract_strided_slice %28 {offsets = [0, 64], sizes = [16, 32], strides = [1, 1]} : vector<16x96xbf16> to vector<16x32xbf16>
    %c0_16 = arith.constant 0 : index
    %c0_17 = arith.constant 0 : index
    %34 = vector.load %arg7[%c0_16, %c0_17] : memref<16x32xbf16, #tpu.memory_space<vmem>>, vector<16x32xbf16>
    tpu.vector_store %arg7[%c0_16, %c0_17], %33 {strides = array<i32>} : memref<16x32xbf16, #tpu.memory_space<vmem>>, vector<16x32xbf16>,
    return
  }
  func.func @transform_0(%arg0: i32) -> (i32, i32) {
    %c0_i32 = arith.constant 0 : i32
    %c0_i32_0 = arith.constant 0 : i32
    return %arg0, %c0_i32 : i32, i32
  }
  func.func @transform_1(%arg0: i32) -> (i32, i32) {
    %c0_i32 = arith.constant 0 : i32
    %c0_i32_0 = arith.constant 0 : i32
    %c0_i32_1 = arith.constant 0 : i32
    return %c0_i32, %c0_i32_0 : i32, i32
  }
  func.func @transform_2(%arg0: i32) -> (i32, i32) {
    %c0_i32 = arith.constant 0 : i32
    %c0_i32_0 = arith.constant 0 : i32
    %c0_i32_1 = arith.constant 0 : i32
    return %c0_i32, %c0_i32_0 : i32, i32
  }
  func.func @transform_3(%arg0: i32) -> (i32, i32) {
    %c0_i32 = arith.constant 0 : i32
    %c0_i32_0 = arith.constant 0 : i32
    %c0_i32_1 = arith.constant 0 : i32
    return %c0_i32, %c0_i32_0 : i32, i32
  }
  func.func @transform_4(%arg0: i32) -> (i32, i32) {
    %c0_i32 = arith.constant 0 : i32
    %c0_i32_0 = arith.constant 0 : i32
    return %arg0, %c0_i32 : i32, i32
  }
  func.func @transform_5(%arg0: i32) -> (i32, i32) {
    %c0_i32 = arith.constant 0 : i32
    %c0_i32_0 = arith.constant 0 : i32
    return %arg0, %c0_i32 : i32, i32
  }
  func.func @transform_6(%arg0: i32) -> (i32, i32) {
    %c0_i32 = arith.constant 0 : i32
    %c0_i32_0 = arith.constant 0 : i32
    return %arg0, %c0_i32 : i32, i32
  }
}

</mosaic_0001>

<llo_original>
// kernel: tpu_custom_call.1
$region0: #{tpu_custom_call.1}
  #allocation0 [shape = 'u32[]', space=smem, size = 0x4, offset = 0x4, fixed_abs, tag = 'smem constant byte address 0x4 - core index']
  #allocation1 [shape = 'u32[144,128]{1,0:T(1,128)}', space=vmem, size = 0x12000, scoped, tag = 'internal scratch']
  %s0 = inlined_call_operand.hbm [shape: f32[16,32], index: 0, kind: input, shape index: {}]
  %s1 = inlined_call_operand.vmem [shape: f32[1,32], index: 1, kind: input, shape index: {}]
  %s2 = inlined_call_operand.vmem [shape: f32[1,32], index: 2, kind: input, shape index: {}]
  %s3 = inlined_call_operand.hbm [shape: bf16[32,96], index: 3, kind: input, shape index: {}]
  %s4 = inlined_call_operand.hbm [shape: bf16[16,32], index: 4, kind: output, shape index: {0}]
  %s5 = inlined_call_operand.hbm [shape: bf16[16,32], index: 5, kind: output, shape index: {1}]
  %s6 = inlined_call_operand.hbm [shape: bf16[16,32], index: 6, kind: output, shape index: {2}]
  %7 = xla_tuple %s4, %s5, %s6
  %s8 = sld [smem:[#allocation0]]
  $region50: #{tpu_custom_call.1} parent=0
    _
  %s10 = ssub.s32 1, %s8
  %s11 = scalar_select 0, %s10, %s8
  $region1: #{tpu_custom_call.1} parent=0
    #allocation2 [shape = 'u8[8192]{0}', space=vmem, size = 0x2000, scoped, tag = 'input window, operand 0, single buffered']
    #allocation3 [shape = 's32[1]{0}', space=sflag, size = 0x4, scoped, tag = 'scoped memory for tpu_custom_call.1']
    #allocation4 [shape = 's32[1]{0}', space=sflag, size = 0x4, scoped, tag = 'scoped memory for tpu_custom_call.1']
    #allocation5 [shape = 'u8[8192]{0}', space=vmem, size = 0x2000, scoped, tag = 'input window, operand 3, single buffered']
    #allocation6 [shape = 's32[1]{0}', space=sflag, size = 0x4, scoped, tag = 'scoped memory for tpu_custom_call.1']
    #allocation7 [shape = 'u8[4096]{0}', space=vmem, size = 0x1000, scoped, tag = 'output window, operand 0, single buffered']
    #allocation8 [shape = 'u8[4096]{0}', space=vmem, size = 0x1000, scoped, tag = 'output window, operand 1, single buffered']
    #allocation9 [shape = 's32[1]{0}', space=sflag, size = 0x4, scoped, tag = 'scoped memory for tpu_custom_call.1']
    #allocation10 [shape = 'u8[4096]{0}', space=vmem, size = 0x1000, scoped, tag = 'output window, operand 2, single buffered']
    %12 = vsyncpa [#allocation3], 0
    %13 = vsyncpa [#allocation6], 0
    %14 = vsyncpa [#allocation4], 0
    %15 = vsyncpa [#allocation9], 0
    // Predicated region
    $region2: #{tpu_custom_call.1} parent=1 // pred_check
      _
    $region3: #{tpu_custom_call.1} parent=1 // pred_check_branch
      %17 = sbr.rel (0) target = $region5
    $region4: #{tpu_custom_call.1} parent=1 // pred_region
      %s19 = ssub.s32 256, 256
      %20 = vsyncadd [#allocation3], %s19
      %s21 = sshll.u32 [#allocation2], 4
      %s22 = int_to_ptr.vmem [resolvable:$true] %s21
      %27 = dma.hbm_to_vmem [thread:$0]  %s0, 256, %s22, [#allocation3], 128, 128, 8
    $region5: #{tpu_custom_call.1} parent=1 // pred_fallthru
      _
    // Predicated region
    $region6: #{tpu_custom_call.1} parent=1 // pred_check
      _
    $region7: #{tpu_custom_call.1} parent=1 // pred_check_branch
      %29 = sbr.rel (0) target = $region9
    $region8: #{tpu_custom_call.1} parent=1 // pred_region
      _
    $region9: #{tpu_custom_call.1} parent=1 // pred_fallthru
      _
    // Predicated region
    $region10: #{tpu_custom_call.1} parent=1 // pred_check
      _
    $region11: #{tpu_custom_call.1} parent=1 // pred_check_branch
      %31 = sbr.rel (0) target = $region13
    $region12: #{tpu_custom_call.1} parent=1 // pred_region
      _
    $region13: #{tpu_custom_call.1} parent=1 // pred_fallthru
      _
    // Predicated region
    $region14: #{tpu_custom_call.1} parent=1 // pred_check
      _
    $region15: #{tpu_custom_call.1} parent=1 // pred_check_branch
      %33 = sbr.rel (0) target = $region17
    $region16: #{tpu_custom_call.1} parent=1 // pred_region
      %s35 = ssub.s32 256, 256
      %36 = vsyncadd [#allocation6], %s35
      %s37 = sshll.u32 [#allocation5], 4
      %s38 = int_to_ptr.vmem [resolvable:$true] %s37
      %43 = dma.hbm_to_vmem [thread:$0]  %s3, 256, %s38, [#allocation6], 64, 64, 4
    $region17: #{tpu_custom_call.1} parent=1 // pred_fallthru
      _
    // Predicated region
    $region18: #{tpu_custom_call.1} parent=1 // pred_check
      _
    $region19: #{tpu_custom_call.1} parent=1 // pred_check_branch
      %45 = sbr.rel (0) target = $region21
    $region20: #{tpu_custom_call.1} parent=1 // pred_region
      %46 = dma.done [#allocation3], 256
    $region21: #{tpu_custom_call.1} parent=1 // pred_fallthru
      _
    // Predicated region
    $region22: #{tpu_custom_call.1} parent=1 // pred_check
      _
    $region23: #{tpu_custom_call.1} parent=1 // pred_check_branch
      %48 = sbr.rel (0) target = $region25
    $region24: #{tpu_custom_call.1} parent=1 // pred_region
      %49 = dma.done [#allocation6], 256
    $region25: #{tpu_custom_call.1} parent=1 // pred_fallthru
      _
    %v51 = vld [vmem:[#allocation2] sm:$0xff]
    %v52 = vld [vmem:[#allocation2 + $0x8] sm:$0xff]
    %v53 = vld [vmem:[%s1] sm:$0x1]
    %v54 = vld [vmem:[%s2] sm:$0x1]
    %vm55 = vcmask 261120
    %v56 = vsel %vm55, %v51, 0.0
    %57 = vadd.xlane.f32.xlu0 %v56
    %v58 = vpop.xlane.xlu0 %57
    %v59 = vsel %vm55, %v52, 0.0
    %60 = vadd.xlane.f32.xlu0 %v59
    %v61 = vpop.xlane.xlu0 %60
    %v62 = vrcp.pop 32.0
    %v63 = vmul.f32 %v58, %v62
    %v64 = vmul.f32 %v61, %v62
    %v65 = vsub.f32 %v51, %v63
    %v66 = vsub.f32 %v52, %v64
    %v67 = vmul.f32 %v65, %v65
    %v68 = vmul.f32 %v66, %v66
    %v69 = vsel %vm55, %v67, 0.0
    %70 = vadd.xlane.f32.xlu0 %v69
    %v71 = vpop.xlane.xlu0 %70
    %v72 = vsel %vm55, %v68, 0.0
    %73 = vadd.xlane.f32.xlu0 %v72
    %v74 = vpop.xlane.xlu0 %73
    %v75 = vmul.f32 %v71, %v62
    %v76 = vmul.f32 %v74, %v62
    %v77 = vadd.f32 %v75, 1e-05
    %v78 = vadd.f32 %v76, 1e-05
    %v79 = vrsqrt.pop %v77
    %v80 = vrsqrt.pop %v78
    %v81 = vmul.f32 %v65, %v79
    %v82 = vmul.f32 %v66, %v80
    %v84 = vlaneseq
    %v85 = vshrl.u32 %v84, 7
    %v86 = vsub.s32 0, %v85
    %v87 = vrot.slane %v53, %v86
    %v89 = vmul.f32 %v81, %v87
    %v90 = vmul.f32 %v82, %v87
    %v92 = vlaneseq
    %v93 = vshrl.u32 %v92, 7
    %v94 = vsub.s32 0, %v93
    %v95 = vrot.slane %v54, %v94
    %v97 = vadd.f32 %v89, %v95
    %v98 = vadd.f32 %v90, %v95
    %v99 = vpack.c.bf16 %v98, %v97
    %v100 = vld [vmem:[#allocation5] sm:$0xf]
    %v101 = vld [vmem:[#allocation5 + $0x4] sm:$0xf]
    %v102 = vld [vmem:[#allocation5 + $0x8] sm:$0xf]
    %v103 = vld [vmem:[#allocation5 + $0xc] sm:$0xf]
    %v108 = vunpack.c.l.b16 %v100
    %v109 = vunpack.c.l.b16 %v101
    %v110 = vunpack.c.l.b16 %v102
    %v111 = vunpack.c.l.b16 %v103
    %v112 = vpack.c.b16 %v109, %v108
    %v113 = vpack.c.b16 %v111, %v110
    %v117 = vsel %vm55, %v99, 0
    %119 = vmatprep.subr.bf16.mxu0 0
    %120 = vmatpush1.bf16.msra.mxu0 %v112
    %121 = vmatprep.subr.bf16.mxu0 0
    %122 = vmatpush1.bf16.msra.mxu0 %v113
    %123 = vmatprep.subr.bf16.mxu0 0
    %124 = vmatpush1.bf16.msra.mxu0 0
    %125 = vmatprep.subr.bf16.mxu0 0
    %126 = vmatpush1.bf16.msra.mxu0 0
    %127 = vmatprep.subr.bf16.mxu0 0
    %128 = vmatpush1.bf16.msra.mxu0 0
    %129 = vmatprep.subr.bf16.mxu0 0
    %130 = vmatpush1.bf16.msra.mxu0 0
    %131 = vmatprep.subr.bf16.mxu0 0
    %132 = vmatpush1.bf16.msra.mxu0 0
    %133 = vmatprep.subr.bf16.mxu0 0
    %134 = vmatpush1.bf16.msra.mxu0 0
    %135 = vmatprep.subr.bf16.mxu0 0
    %136 = vmatpush1.bf16.msra.mxu0 0
    %137 = vmatprep.subr.bf16.mxu0 0
    %138 = vmatpush1.bf16.msra.mxu0 0
    %139 = vmatprep.subr.bf16.mxu0 0
    %140 = vmatpush1.bf16.msra.mxu0 0
    %141 = vmatprep.subr.bf16.mxu0 0
    %142 = vmatpush1.bf16.msra.mxu0 0
    %143 = vmatprep.subr.bf16.mxu0 0
    %144 = vmatpush1.bf16.msra.mxu0 0
    %145 = vmatprep.subr.bf16.mxu0 0
    %146 = vmatpush1.bf16.msra.mxu0 0
    %147 = vmatprep.subr.bf16.mxu0 0
    %148 = vmatpush1.bf16.msra.mxu0 0
    %149 = vmatprep.subr.bf16.mxu0 0
    %150 = vmatpush1.bf16.msra.mxu0 0
    %151 = vmatprep.mubr.bf16.mxu0 0
    %152 = vmatmul.mubr.bf16.gmra.mrb[0].mxu0 %v117
    %v153 = vpop.f32.mrb[0].mxu0
    %v154 = vadd.f32 0.0, %v153
    %v155 = vpop.f32.mrb[0].mxu0
    %v156 = vpop.f32.mrb[0].mxu0
    %v157 = vadd.f32 0.0, %v156
    %v158 = vpop.f32.mrb[0].mxu0
    %159 = vdwg.mxu0
    %v160 = vpack.c.bf16 %v157, %v154
    %v162 = vunpack.c.l.b16 %v160
    %v163 = vunpack.c.h.b16 %v160
    %v164 = vpack.c.b16 %v162, %v162
    %v165 = vpack.c.b16 %v163, %v163
    %vm168 = vcmask 257024
    %169 = vst.msk [vmem:[#allocation7] sm:$0xf] %vm168, %v164
    %170 = vst.msk [vmem:[#allocation7 + $0x4] sm:$0xf] %vm168, %v165
    %171 = vrot.lane.b32.xlu0 %v164, 96
    %v172 = vpop.permute.xlu0 %171
    %173 = vrot.lane.b32.xlu0 %v165, 96
    %v174 = vpop.permute.xlu0 %173
    %177 = vst.msk [vmem:[#allocation8] sm:$0xf] %vm168, %v172
    %178 = vst.msk [vmem:[#allocation8 + $0x4] sm:$0xf] %vm168, %v174
    %179 = vrot.lane.b32.xlu0 %v164, 64
    %v180 = vpop.permute.xlu0 %179
    %181 = vrot.lane.b32.xlu0 %v165, 64
    %v182 = vpop.permute.xlu0 %181
    %185 = vst.msk [vmem:[#allocation10] sm:$0xf] %vm168, %v180
    %186 = vst.msk [vmem:[#allocation10 + $0x4] sm:$0xf] %vm168, %v182
    // Predicated region
    $region26: #{tpu_custom_call.1} parent=1 // pred_check
      _
    $region27: #{tpu_custom_call.1} parent=1 // pred_check_branch
      %188 = sbr.rel (0) target = $region29
    $region28: #{tpu_custom_call.1} parent=1 // pred_region
      %s190 = ssub.s32 128, 128
      %191 = vsyncadd [#allocation4], %s190
      %s192 = sshll.u32 [#allocation7], 4
      %s193 = int_to_ptr.vmem [resolvable:$true] %s192
      %198 = dma.vmem_to_hbm [thread:$0]  %s193, 128, %s4, [#allocation4], 64, 64, 4
    $region29: #{tpu_custom_call.1} parent=1 // pred_fallthru
      _
    // Predicated region
    $region30: #{tpu_custom_call.1} parent=1 // pred_check
      _
    $region31: #{tpu_custom_call.1} parent=1 // pred_check_branch
      %200 = sbr.rel (0) target = $region33
    $region32: #{tpu_custom_call.1} parent=1 // pred_region
      %s202 = ssub.s32 128, 128
      %203 = vsyncadd [#allocation9], %s202
      %s204 = sshll.u32 [#allocation8], 4
      %s205 = int_to_ptr.vmem [resolvable:$true] %s204
      %210 = dma.vmem_to_hbm [thread:$0]  %s205, 128, %s5, [#allocation9], 64, 64, 4
    $region33: #{tpu_custom_call.1} parent=1 // pred_fallthru
      _
    // Predicated region
    $region34: #{tpu_custom_call.1} parent=1 // pred_check
      _
    $region35: #{tpu_custom_call.1} parent=1 // pred_check_branch
      %212 = sbr.rel (0) target = $region37
    $region36: #{tpu_custom_call.1} parent=1 // pred_region
      %s214 = ssub.s32 128, 128
      %215 = vsyncadd [#allocation9], %s214
      %s216 = sshll.u32 [#allocation10], 4
      %s217 = int_to_ptr.vmem [resolvable:$true] %s216
      %222 = dma.vmem_to_hbm [thread:$0]  %s217, 128, %s6, [#allocation9], 64, 64, 4
    $region37: #{tpu_custom_call.1} parent=1 // pred_fallthru
      _
    // Predicated region
    $region38: #{tpu_custom_call.1} parent=1 // pred_check
      _
    $region39: #{tpu_custom_call.1} parent=1 // pred_check_branch
      %224 = sbr.rel (0) target = $region41
    $region40: #{tpu_custom_call.1} parent=1 // pred_region
      %225 = dma.done [#allocation4], 128
    $region41: #{tpu_custom_call.1} parent=1 // pred_fallthru
      _
    // Predicated region
    $region42: #{tpu_custom_call.1} parent=1 // pred_check
      _
    $region43: #{tpu_custom_call.1} parent=1 // pred_check_branch
      %227 = sbr.rel (0) target = $region45
    $region44: #{tpu_custom_call.1} parent=1 // pred_region
      %228 = dma.done [#allocation9], 128
    $region45: #{tpu_custom_call.1} parent=1 // pred_fallthru
      _
    // Predicated region
    $region46: #{tpu_custom_call.1} parent=1 // pred_check
      _
    $region47: #{tpu_custom_call.1} parent=1 // pred_check_branch
      %230 = sbr.rel (0) target = $region49
    $region48: #{tpu_custom_call.1} parent=1 // pred_region
      %231 = dma.done [#allocation9], 128
    $region49: #{tpu_custom_call.1} parent=1 // pred_fallthru
      _
    %232 = vsyncpa [#allocation3], 1
    %233 = vsyncpa [#allocation6], 1
    %234 = vsyncpa [#allocation4], 1
    %235 = vsyncpa [#allocation9], 1

</llo_original>
